<compile_context>
chip_gen: v6e
topology: v6e:2x2x1
jax: 0.10.0
libtpu: 0.0.40
codegen_flags: <defaults>
</compile_context>

<pallas_src>
import functools

import jax
import jax.numpy as jnp
from jax.experimental import pallas as pl
from jax.experimental.pallas import tpu as pltpu

_LANE = 128


def _round_up(n, m):
    return ((n + m - 1) // m) * m


@functools.lru_cache(maxsize=1)
def _chip_budgets():
    """(fused_budget_bytes, vmem_limit_bytes), generation-aware."""
    cap = 0
    try:
        info = pltpu.get_tpu_info()
        cap = int(getattr(info, "vmem_capacity_bytes", 0) or 0)
    except Exception:
        cap = 0
    if cap <= 0:
        cap = 64 * 1024 * 1024          # conservative: v7x per-TC VMEM
    vmem_limit = min((cap * 3) // 4, 96 * 1024 * 1024)
    fused_budget = min(cap // 2, 64 * 1024 * 1024)
    return int(fused_budget), int(vmem_limit)


@functools.lru_cache(maxsize=1)
def _tensorcores_per_chip():
    """Best-effort TC count; defaults to 1 (no row-split) if unknown."""
    try:
        info = pltpu.get_tpu_info()
        for name in ("tensorcores_per_chip", "num_tensorcores", "num_cores",
                     "cores_per_chip"):
            v = getattr(info, name, None)
            if isinstance(v, int) and v > 0:
                return v
    except Exception:
        pass
    try:
        kind = jax.devices()[0].device_kind.lower()
        if "v7" in kind:
            return 2
    except Exception:
        pass
    return 1


def _divisor_tiles(dim, candidates=(512, 384, 256, 128)):
    tiles = [c for c in candidates if c <= dim and dim % c == 0]
    return tiles or [dim]


# --------------------------------------------------------------------------
# Path 1: fully fused, one grid step per (batch, row-block).
# --------------------------------------------------------------------------
def _fused_kernel(x_ref, wcol_ref, wrow_ref, out_ref):
    # tmp = x @ W_col   (fp32 accumulate on the MXU)
    tmp = jnp.dot(x_ref[0], wcol_ref[...], preferred_element_type=jnp.float32)
    # out = W_row_block @ tmp
    out = jnp.dot(wrow_ref[...], tmp.astype(wrow_ref.dtype),
                  preferred_element_type=jnp.float32)
    out_ref[0] = out.astype(out_ref.dtype)


def _arranger_fused_batched(xp, wcolp, wrowp, out_dtype, *, row_blocks=1):
    B, Rp, Cp = xp.shape
    assert Rp % row_blocks == 0
    tr = Rp // row_blocks
    _, vmem_limit = _chip_budgets()
    flops = B * row_blocks * 2 * Rp * Cp * Cp + B * 2 * Rp * Rp * Cp
    bytes_accessed = (xp.size * xp.dtype.itemsize
                      + wcolp.size * wcolp.dtype.itemsize
                      + wrowp.size * wrowp.dtype.itemsize
                      + B * Rp * Cp * jnp.dtype(out_dtype).itemsize)
    return pl.pallas_call(
        _fused_kernel,
        out_shape=jax.ShapeDtypeStruct((B, Rp, Cp), out_dtype),
        grid=(B, row_blocks),
        in_specs=[
            pl.BlockSpec((1, Rp, Cp), lambda b, r: (b, 0, 0)),
            pl.BlockSpec((Cp, Cp), lambda b, r: (0, 0)),   # weights resident
            pl.BlockSpec((tr, Rp), lambda b, r: (r, 0)),
        ],
        out_specs=pl.BlockSpec((1, tr, Cp), lambda b, r: (b, r, 0)),
        compiler_params=pltpu.CompilerParams(
            dimension_semantics=("parallel", "parallel"),
            vmem_limit_bytes=vmem_limit),
        cost_estimate=pl.CostEstimate(flops=int(flops), transcendentals=0,
                                      bytes_accessed=int(bytes_accessed)),
    )(xp, wcolp, wrowp)


# --------------------------------------------------------------------------
# Path 2: large shapes -- intermediate column block kept in VMEM scratch,
# reused across all W_row row blocks.  No HBM round-trip, single call.
# --------------------------------------------------------------------------
def _colblock_kernel(x_ref, wcol_ref, wrow_ref, out_ref, tmp_ref):
    @pl.when(pl.program_id(2) == 0)
    def _():
        tmp = jnp.dot(x_ref[0], wcol_ref[...],
                      preferred_element_type=jnp.float32)
        tmp_ref[...] = tmp.astype(tmp_ref.dtype)

    out = jnp.dot(wrow_ref[...], tmp_ref[...],
                  preferred_element_type=jnp.float32)
    out_ref[0] = out.astype(out_ref.dtype)


def _arranger_colblock_fused(xp, wcolp, wrowp, out_dtype, tm, tn):
    B, Rp, Cp = xp.shape
    _, vmem_limit = _chip_budgets()
    nj, ni = Cp // tn, Rp // tm
    cd = xp.dtype
    flops = B * (2 * Rp * Cp * Cp + 2 * Rp * Rp * Cp)
    bytes_accessed = (xp.size * xp.dtype.itemsize
                      + wcolp.size * wcolp.dtype.itemsize
                      + wrowp.size * wrowp.dtype.itemsize * nj
                      + B * Rp * Cp * jnp.dtype(out_dtype).itemsize)
    return pl.pallas_call(
        _colblock_kernel,
        out_shape=jax.ShapeDtypeStruct((B, Rp, Cp), out_dtype),
        grid=(B, nj, ni),                  # i innermost: tmp computed at i==0
        in_specs=[
            pl.BlockSpec((1, Rp, Cp), lambda b, j, i: (b, 0, 0)),
            pl.BlockSpec((Cp, tn), lambda b, j, i: (0, j)),
            pl.BlockSpec((tm, Rp), lambda b, j, i: (i, 0)),
        ],
        out_specs=pl.BlockSpec((1, tm, tn), lambda b, j, i: (b, i, j)),
        scratch_shapes=[pltpu.VMEM((Rp, tn), cd)],
        compiler_params=pltpu.CompilerParams(
            dimension_semantics=("parallel", "parallel", "arbitrary"),
            vmem_limit_bytes=vmem_limit),
        cost_estimate=pl.CostEstimate(flops=int(flops), transcendentals=0,
                                      bytes_accessed=int(bytes_accessed)),
    )(xp, wcolp, wrowp)


def _pick_colblock_tiles(Rp, Cp, cd_isz, out_isz, budget):
    best = None
    for tn in _divisor_tiles(Cp):
        for tm in _divisor_tiles(Rp):
            fp = (2 * cd_isz * Rp * Cp       # x (double-buffered)
                  + 2 * cd_isz * Cp * tn     # W_col column block
                  + 2 * cd_isz * tm * Rp     # W_row row block
                  + 2 * out_isz * tm * tn    # out block
                  + cd_isz * Rp * tn         # intermediate scratch
                  + 4 * Rp * tn              # fp32 first-matmul value
                  + 4 * tm * tn)             # fp32 second-matmul value
            if fp <= budget and (best is None or tm * tn > best[0]):
                best = (tm * tn, tm, tn)
    return None if best is None else (best[1], best[2])


# --------------------------------------------------------------------------
# Path 3 (safety net): batched tiled matmul, fp32 accumulator, writeback
# guarded on the last K step, footprint-driven tile selection.
# --------------------------------------------------------------------------
def _bmm_kernel(a_ref, b_ref, o_ref, acc_ref):
    k = pl.program_id(3)

    @pl.when(k == 0)
    def _():
        acc_ref[...] = jnp.zeros_like(acc_ref)

    acc_ref[...] += jnp.dot(a_ref[0], b_ref[0],
                            preferred_element_type=jnp.float32)

    @pl.when(k == pl.num_programs(3) - 1)
    def _():
        o_ref[0] = acc_ref[...].astype(o_ref.dtype)


def _bmm_tiled(a, b, out_dtype):
    """a: (Ba, M, K), b: (Bb, K, N) with Ba/Bb broadcastable -> (B, M, N)."""
    Ba, M, K = a.shape
    Bb, K2, N = b.shape
    assert K == K2 and (Ba == 1 or Bb == 1 or Ba == Bb)
    B = max(Ba, Bb)
    _, vmem_limit = _chip_budgets()
    budget = vmem_limit // 2
    isz_a, isz_b = a.dtype.itemsize, b.dtype.itemsize
    out_isz = jnp.dtype(out_dtype).itemsize

    best = None
    for tm in _divisor_tiles(M):
        for tn in _divisor_tiles(N):
            for tk in _divisor_tiles(K, (1024, 512, 384, 256, 128)):
                fp = (2 * isz_a * tm * tk + 2 * isz_b * tk * tn
                      + 2 * out_isz * tm * tn + 4 * tm * tn)
                if fp <= budget and (best is None or tm * tn * tk > best[0]):
                    best = (tm * tn * tk, tm, tn, tk)
    assert best is not None, "no tile configuration fits VMEM"
    _, tm, tn, tk = best

    if Ba > 1:
        a_map = lambda b_, i, j, k: (b_, i, k)
    else:
        a_map = lambda b_, i, j, k: (0, i, k)
    if Bb > 1:
        b_map = lambda b_, i, j, k: (b_, k, j)
    else:
        b_map = lambda b_, i, j, k: (0, k, j)

    return pl.pallas_call(
        _bmm_kernel,
        out_shape=jax.ShapeDtypeStruct((B, M, N), out_dtype),
        grid=(B, M // tm, N // tn, K // tk),
        in_specs=[pl.BlockSpec((1, tm, tk), a_map),
                  pl.BlockSpec((1, tk, tn), b_map)],
        out_specs=pl.BlockSpec((1, tm, tn), lambda b_, i, j, k: (b_, i, j)),
        scratch_shapes=[pltpu.VMEM((tm, tn), jnp.float32)],
        compiler_params=pltpu.CompilerParams(
            dimension_semantics=("parallel", "parallel", "parallel",
                                 "arbitrary"),
            vmem_limit_bytes=vmem_limit),
        cost_estimate=pl.CostEstimate(
            flops=int(2 * B * M * N * K), transcendentals=0,
            bytes_accessed=int(B * (M * K * isz_a + K * N * isz_b
                                    + M * N * out_isz))),
    )(a, b)


# --------------------------------------------------------------------------
# Public forward.
# --------------------------------------------------------------------------
def _pad_weights(weight_column, weight_row, cd):
    C = weight_column.shape[0]
    R = weight_row.shape[0]
    Cp = _round_up(C, _LANE)
    Rp = _round_up(R, _LANE)
    wcolp = jnp.pad(weight_column.astype(cd), ((0, Cp - C), (0, Cp - C)))
    wrowp = jnp.pad(weight_row.astype(cd), ((0, Rp - R), (0, Rp - R)))
    return wcolp, wrowp


def arranger_forward(x, weight_column, weight_row, *,
                     compute_dtype=jnp.bfloat16, padded_weights=None):
    """out = weight_row @ (x @ weight_column); x may be [R,C] or [B,R,C]."""
    squeeze = (x.ndim == 2)
    if squeeze:
        x = x[None]
    B, R, C = x.shape
    assert weight_column.shape == (C, C)
    assert weight_row.shape == (R, R)
    out_dtype = x.dtype
    cd = jnp.dtype(compute_dtype)

    Rp = _round_up(R, _LANE)
    Cp = _round_up(C, _LANE)
    if padded_weights is None:
        wcolp, wrowp = _pad_weights(weight_column, weight_row, cd)
    else:
        wcolp, wrowp = padded_weights
        assert wcolp.shape == (Cp, Cp) and wrowp.shape == (Rp, Rp)
        assert wcolp.dtype == cd and wrowp.dtype == cd
    xp = jnp.pad(x.astype(cd), ((0, 0), (0, Rp - R), (0, Cp - C)))

    fused_budget, _ = _chip_budgets()
    cd_isz = cd.itemsize
    out_isz = jnp.dtype(out_dtype).itemsize

    # Path 1 footprint: everything for one batch element resident in VMEM.
    fused_bytes = (2 * cd_isz * Rp * Cp        # x (double-buffered)
                   + 2 * cd_isz * Cp * Cp      # W_col
                   + 2 * cd_isz * Rp * Rp      # W_row
                   + 2 * out_isz * Rp * Cp     # out (double-buffered, out dtype)
                   + 4 * Rp * Cp               # fp32 intermediate value
                   + 4 * Rp * Cp)              # fp32 result before cast

    if fused_bytes <= fused_budget:
        row_blocks = 1
        if B == 1 and Rp >= 256 and _tensorcores_per_chip() >= 2:
            # v7x: split output rows across the 2 TensorCores.  The first
            # matmul is recomputed per row block, so this is only enabled
            # when >1 TC is available.
            row_blocks = 2
        outp = _arranger_fused_batched(xp, wcolp, wrowp, out_dtype,
                                       row_blocks=row_blocks)
    else:
        choice = _pick_colblock_tiles(Rp, Cp, cd_isz, out_isz, fused_budget)
        if choice is not None:
            tm, tn = choice
            outp = _arranger_colblock_fused(xp, wcolp, wrowp, out_dtype,
                                            tm, tn)
        else:
            # Huge shapes: two batched tiled passes, intermediate in HBM.
            tmp = _bmm_tiled(xp, wcolp[None], cd)
            outp = _bmm_tiled(wrowp[None], tmp, out_dtype)

    out = outp[:, :R, :C]
    return out[0] if squeeze else out


class ArrangerJAX:
    """Mirror of Arranger / RE_neural_network parameter setup + forward."""

    def __init__(self, matrix_row, matrix_column, key=None,
                 compute_dtype=jnp.bfloat16):
        self.matrix_row = matrix_row
        self.matrix_column = matrix_column
        self.compute_dtype = jnp.dtype(compute_dtype)
        if key is None:
            # __init__ semantics: identity matrices.
            self.weight_column = jnp.eye(matrix_column, dtype=jnp.float32)
            self.weight_row = jnp.eye(matrix_row, dtype=jnp.float32)
        else:
            # reset_parameters semantics: uniform(0, 1).
            kc, kr = jax.random.split(key)
            self.weight_column = jax.random.uniform(
                kc, (matrix_column, matrix_column), dtype=jnp.float32)
            self.weight_row = jax.random.uniform(
                kr, (matrix_row, matrix_row), dtype=jnp.float32)
        # Pre-pad / pre-cast the weights ONCE (avoids per-call HBM copies of
        # both full weight matrices).
        self._padded_weights = _pad_weights(self.weight_column,
                                            self.weight_row,
                                            self.compute_dtype)

    def __call__(self, x):
        return arranger_forward(x, self.weight_column, self.weight_row,
                                compute_dtype=self.compute_dtype,
                                padded_weights=self._padded_weights)


if __name__ == "__main__":
    R, C = 16, 32
    key = jax.random.PRNGKey(0)
    kx, kb, kparams = jax.random.split(key, 3)

    x = jax.random.normal(kx, (R, C), dtype=jnp.float32)
    model = ArrangerJAX(R, C, key=kparams)   # uniform init (reset_parameters)
    wcol, wrow = model.weight_column, model.weight_row

    # --- single-instance forward (fused kernel, B=1) ---
    out = jax.block_until_ready(model(x))
    assert out.shape == (R, C)

    # Tight check against the same bf16-input / fp32-accumulate math.
    xb, wcb, wrb = (a.astype(jnp.bfloat16) for a in (x, wcol, wrow))
    tmp = jnp.dot(xb, wcb, preferred_element_type=jnp.float32).astype(jnp.bfloat16)
    ref_bf16 = jnp.dot(wrb, tmp, preferred_element_type=jnp.float32)
    assert jnp.allclose(out, ref_bf16, atol=5e-2, rtol=2e-2)

    # Loose check against the exact fp32 math of the PyTorch module.
    ref_f32 = jnp.matmul(wrow, jnp.matmul(x, wcol))
    assert jnp.allclose(out, ref_f32, atol=0.5, rtol=5e-2)

    # --- batched forward: many instances in one pallas_call (grid over B) ---
    xbat = jax.random.normal(kb, (4, R, C), dtype=jnp.float32)
    out_b = jax.block_until_ready(model(xbat))
    ref_b = jnp.einsum("rk,bkc->brc", wrow, jnp.einsum("brk,kc->brc", xbat, wcol))
    assert out_b.shape == (4, R, C)
    assert jnp.allclose(out_b, ref_b, atol=0.5, rtol=5e-2)

    # --- Path 2: column-block fused kernel (intermediate kept in VMEM) ---
    cd = jnp.bfloat16
    B2, R2, C2 = 2, 256, 384
    k2 = jax.random.split(jax.random.PRNGKey(1), 3)
    x2 = jax.random.normal(k2[0], (B2, R2, C2), dtype=jnp.float32).astype(cd)
    wcol2 = jax.random.uniform(k2[1], (C2, C2), dtype=jnp.float32).astype(cd)
    wrow2 = jax.random.uniform(k2[2], (R2, R2), dtype=jnp.float32).astype(cd)
    out_cb = jax.block_until_ready(
        _arranger_colblock_fused(x2, wcol2, wrow2, jnp.float32, 128, 128))
    tmp2 = jnp.einsum("brk,kc->brc", x2, wcol2,
                      preferred_element_type=jnp.float32).astype(cd)
    ref2 = jnp.einsum("rk,bkc->brc", wrow2, tmp2,
                      preferred_element_type=jnp.float32)
    assert out_cb.shape == (B2, R2, C2)
    assert jnp.allclose(out_cb, ref2, atol=1.0, rtol=2e-2)

    # --- Path 3: batched tiled matmul fallback (guarded K writeback) ---
    tmp3 = _bmm_tiled(x2, wcol2[None], cd)
    out3 = jax.block_until_ready(_bmm_tiled(wrow2[None], tmp3, jnp.float32))
    assert out3.shape == (B2, R2, C2)
    assert jnp.allclose(out3, ref2, atol=1.0, rtol=2e-2)

    # --- row-split fused variant (v7x 2-TC path), forced for coverage ---
    x3 = jax.random.normal(k2[0], (1, 256, 128), dtype=jnp.float32).astype(cd)
    wcol3 = jax.random.uniform(k2[1], (128, 128), dtype=jnp.float32).astype(cd)
    wrow3 = jax.random.uniform(k2[2], (256, 256), dtype=jnp.float32).astype(cd)
    out_rs = jax.block_until_ready(
        _arranger_fused_batched(x3, wcol3, wrow3, jnp.float32, row_blocks=2))
    tmp_rs = jnp.dot(x3[0], wcol3, preferred_element_type=jnp.float32).astype(cd)
    ref_rs = jnp.dot(wrow3, tmp_rs, preferred_element_type=jnp.float32)
    assert jnp.allclose(out_rs[0], ref_rs, atol=1.0, rtol=2e-2)

    print("KERNEL_OK")
</pallas_src>

<mosaic_0001>
module attributes {stable_mosaic.version = 11 : i64} {
  func.func @_fused_kernel(%arg0: i32, %arg1: i32, %arg2: memref<1x128x128xbf16, #tpu.memory_space<vmem>>, %arg3: memref<128x128xbf16, #tpu.memory_space<vmem>>, %arg4: memref<128x128xbf16, #tpu.memory_space<vmem>>, %arg5: memref<1x128x128xf32, #tpu.memory_space<vmem>>) attributes {dimension_semantics = [#tpu.dimension_semantics<parallel>, #tpu.dimension_semantics<parallel>], iteration_bounds = array<i64: 1, 1>, scalar_prefetch = 0 : i64, scratch_operands = 0 : i64, tpu.core_type = #tpu.core_type<tc>, window_params = [{transform_indices = @transform_0, window_bounds = array<i64: 1, 128, 128>}, {pipeline_mode = #tpu.pipeline_mode<synchronous>, transform_indices = @transform_1, window_bounds = array<i64: 128, 128>}, {transform_indices = @transform_2, window_bounds = array<i64: 128, 128>}, {transform_indices = @transform_3, window_bounds = array<i64: 1, 128, 128>}]} {
    %c0 = arith.constant 0 : index
    %c0_0 = arith.constant 0 : index
    %c0_1 = arith.constant 0 : index
    %0 = vector.load %arg2[%c0, %c0_0, %c0_1] : memref<1x128x128xbf16, #tpu.memory_space<vmem>>, vector<1x128x128xbf16>
    %1 = vector.shape_cast %0 : vector<1x128x128xbf16> to vector<128x128xbf16>
    %c0_2 = arith.constant 0 : index
    %c0_3 = arith.constant 0 : index
    %2 = vector.load %arg3[%c0_2, %c0_3] : memref<128x128xbf16, #tpu.memory_space<vmem>>, vector<128x128xbf16>
    %cst = arith.constant dense<0.000000e+00> : vector<128x128xf32>
    %3 = tpu.matmul %1, %2, %cst {dimension_numbers = #tpu.dot_dimension_numbers<[1], [0], [0], [1], [0, 0, 1, 1], [], []>} : vector<128x128xbf16>, vector<128x128xbf16>, vector<128x128xf32> -> vector<128x128xf32>
    %c0_4 = arith.constant 0 : index
    %c0_5 = arith.constant 0 : index
    %4 = vector.load %arg4[%c0_4, %c0_5] : memref<128x128xbf16, #tpu.memory_space<vmem>>, vector<128x128xbf16>
    %5 = arith.truncf %3 : vector<128x128xf32> to vector<128x128xbf16>
    %cst_6 = arith.constant dense<0.000000e+00> : vector<128x128xf32>
    %6 = tpu.matmul %4, %5, %cst_6 {dimension_numbers = #tpu.dot_dimension_numbers<[1], [0], [0], [1], [0, 0, 1, 1], [], []>} : vector<128x128xbf16>, vector<128x128xbf16>, vector<128x128xf32> -> vector<128x128xf32>
    %c0_7 = arith.constant 0 : index
    %c0_8 = arith.constant 0 : index
    %c0_9 = arith.constant 0 : index
    %7 = vector.load %arg5[%c0_7, %c0_8, %c0_9] : memref<1x128x128xf32, #tpu.memory_space<vmem>>, vector<1x128x128xf32>
    %8 = vector.shape_cast %7 : vector<1x128x128xf32> to vector<128x128xf32>
    %9 = vector.shape_cast %6 : vector<128x128xf32> to vector<1x128x128xf32>
    tpu.vector_store %arg5[%c0_7, %c0_8, %c0_9], %9 {strides = array<i32>} : memref<1x128x128xf32, #tpu.memory_space<vmem>>, vector<1x128x128xf32>,
    return
  }
  func.func @transform_0(%arg0: i32, %arg1: i32) -> (i32, i32, i32) {
    %c0_i32 = arith.constant 0 : i32
    %c0_i32_0 = arith.constant 0 : i32
    %c0_i32_1 = arith.constant 0 : i32
    return %arg0, %c0_i32, %c0_i32_0 : i32, i32, i32
  }
  func.func @transform_1(%arg0: i32, %arg1: i32) -> (i32, i32) {
    %c0_i32 = arith.constant 0 : i32
    %c0_i32_0 = arith.constant 0 : i32
    %c0_i32_1 = arith.constant 0 : i32
    return %c0_i32, %c0_i32_0 : i32, i32
  }
  func.func @transform_2(%arg0: i32, %arg1: i32) -> (i32, i32) {
    %c0_i32 = arith.constant 0 : i32
    %c0_i32_0 = arith.constant 0 : i32
    return %arg1, %c0_i32 : i32, i32
  }
  func.func @transform_3(%arg0: i32, %arg1: i32) -> (i32, i32, i32) {
    %c0_i32 = arith.constant 0 : i32
    %c0_i32_0 = arith.constant 0 : i32
    return %arg0, %arg1, %c0_i32 : i32, i32, i32
  }
}

</mosaic_0001>

<llo_original>
// kernel: tpu_custom_call.1
$region0: #{tpu_custom_call.1}
  #allocation0 [shape = 'u32[]', space=smem, size = 0x4, offset = 0x4, fixed_abs, tag = 'smem constant byte address 0x4 - core index']
  #allocation1 [shape = 'u32[144,128]{1,0:T(1,128)}', space=vmem, size = 0x12000, scoped, tag = 'internal scratch']
  %s0 = inlined_call_operand.hbm [shape: bf16[1,128,128], index: 0, kind: input, shape index: {}]
  %s1 = inlined_call_operand.hbm [shape: bf16[128,128], index: 1, kind: input, shape index: {}]
  %s2 = inlined_call_operand.hbm [shape: bf16[128,128], index: 2, kind: input, shape index: {}]
  %s3 = inlined_call_operand.hbm [shape: f32[1,128,128], index: 3, kind: output, shape index: {}]
  %s4 = sld [smem:[#allocation0]]
  $region34: #{tpu_custom_call.1} parent=0
    _
  %s6 = ssub.s32 1, %s4
  %s7 = scalar_select 0, %s6, %s4
  $region1: #{tpu_custom_call.1} parent=0
    #allocation2 [shape = 'u8[32768]{0}', space=vmem, size = 0x8000, scoped, tag = 'input window, operand 0, single buffered']
    #allocation3 [shape = 's32[1]{0}', space=sflag, size = 0x4, scoped, tag = 'scoped memory for tpu_custom_call.1']
    #allocation4 [shape = 's32[1]{0}', space=sflag, size = 0x4, scoped, tag = 'scoped memory for tpu_custom_call.1']
    #allocation5 [shape = 'u8[32768]{0}', space=vmem, size = 0x8000, scoped, tag = 'input window, operand 1, single buffered']
    #allocation6 [shape = 's32[1]{0}', space=sflag, size = 0x4, scoped, tag = 'scoped memory for tpu_custom_call.1']
    #allocation7 [shape = 'u8[32768]{0}', space=vmem, size = 0x8000, scoped, tag = 'input window, operand 2, single buffered']
    #allocation8 [shape = 'u8[65536]{0}', space=vmem, size = 0x10000, scoped, tag = 'output window, operand 0, single buffered']
    %8 = vsyncpa [#allocation3], 0
    %9 = vsyncpa [#allocation6], 0
    %10 = vsyncpa [#allocation4], 0
    // Predicated region
    $region2: #{tpu_custom_call.1} parent=1 // pred_check
      _
    $region3: #{tpu_custom_call.1} parent=1 // pred_check_branch
      %12 = sbr.rel (0) target = $region5
    $region4: #{tpu_custom_call.1} parent=1 // pred_region
      %s14 = ssub.s32 1024, 1024
      %15 = vsyncadd [#allocation3], %s14
      %s16 = sshll.u32 [#allocation2], 4
      %s17 = int_to_ptr.vmem [resolvable:$true] %s16
      %22 = dma.hbm_to_vmem [thread:$0]  %s0, 1024, %s17, [#allocation3], 64, 64, 4
    $region5: #{tpu_custom_call.1} parent=1 // pred_fallthru
      _
    // Predicated region
    $region6: #{tpu_custom_call.1} parent=1 // pred_check
      _
    $region7: #{tpu_custom_call.1} parent=1 // pred_check_branch
      %24 = sbr.rel (0) target = $region9
    $region8: #{tpu_custom_call.1} parent=1 // pred_region
      %s26 = ssub.s32 1024, 1024
      %27 = vsyncadd [#allocation6], %s26
      %s28 = sshll.u32 [#allocation5], 4
      %s29 = int_to_ptr.vmem [resolvable:$true] %s28
      %34 = dma.hbm_to_vmem [thread:$0]  %s1, 1024, %s29, [#allocation6], 64, 64, 4
    $region9: #{tpu_custom_call.1} parent=1 // pred_fallthru
      _
    // Predicated region
    $region10: #{tpu_custom_call.1} parent=1 // pred_check
      _
    $region11: #{tpu_custom_call.1} parent=1 // pred_check_branch
      %36 = sbr.rel (0) target = $region13
    $region12: #{tpu_custom_call.1} parent=1 // pred_region
      %s38 = ssub.s32 1024, 1024
      %39 = vsyncadd [#allocation6], %s38
      %s40 = sshll.u32 [#allocation7], 4
      %s41 = int_to_ptr.vmem [resolvable:$true] %s40
      %46 = dma.hbm_to_vmem [thread:$0]  %s2, 1024, %s41, [#allocation6], 64, 64, 4
    $region13: #{tpu_custom_call.1} parent=1 // pred_fallthru
      _
    // Predicated region
    $region14: #{tpu_custom_call.1} parent=1 // pred_check
      _
    $region15: #{tpu_custom_call.1} parent=1 // pred_check_branch
      %48 = sbr.rel (0) target = $region17
    $region16: #{tpu_custom_call.1} parent=1 // pred_region
      %49 = dma.done [#allocation3], 1024
    $region17: #{tpu_custom_call.1} parent=1 // pred_fallthru
      _
    // Predicated region
    $region18: #{tpu_custom_call.1} parent=1 // pred_check
      _
    $region19: #{tpu_custom_call.1} parent=1 // pred_check_branch
      %51 = sbr.rel (0) target = $region21
    $region20: #{tpu_custom_call.1} parent=1 // pred_region
      %52 = dma.done [#allocation6], 1024
    $region21: #{tpu_custom_call.1} parent=1 // pred_fallthru
      _
    // Predicated region
    $region22: #{tpu_custom_call.1} parent=1 // pred_check
      _
    $region23: #{tpu_custom_call.1} parent=1 // pred_check_branch
      %54 = sbr.rel (0) target = $region25
    $region24: #{tpu_custom_call.1} parent=1 // pred_region
      %55 = dma.done [#allocation6], 1024
    $region25: #{tpu_custom_call.1} parent=1 // pred_fallthru
      _
    %v57 = vld [vmem:[#allocation2] sm:$0xf]
    %v58 = vld [vmem:[#allocation2 + $0x4] sm:$0xf]
    %v59 = vld [vmem:[#allocation2 + $0x8] sm:$0xf]
    %v60 = vld [vmem:[#allocation2 + $0xc] sm:$0xf]
    %v61 = vld [vmem:[#allocation2 + $0x10] sm:$0xf]
    %v62 = vld [vmem:[#allocation2 + $0x14] sm:$0xf]
    %v63 = vld [vmem:[#allocation2 + $0x18] sm:$0xf]
    %v64 = vld [vmem:[#allocation2 + $0x1c] sm:$0xf]
    %v65 = vld [vmem:[#allocation2 + $0x20] sm:$0xf]
    %v66 = vld [vmem:[#allocation2 + $0x24] sm:$0xf]
    %v67 = vld [vmem:[#allocation2 + $0x28] sm:$0xf]
    %v68 = vld [vmem:[#allocation2 + $0x2c] sm:$0xf]
    %v69 = vld [vmem:[#allocation2 + $0x30] sm:$0xf]
    %v70 = vld [vmem:[#allocation2 + $0x34] sm:$0xf]
    %v71 = vld [vmem:[#allocation2 + $0x38] sm:$0xf]
    %v72 = vld [vmem:[#allocation2 + $0x3c] sm:$0xf]
    %v73 = vld [vmem:[#allocation5] sm:$0xf]
    %v74 = vld [vmem:[#allocation5 + $0x4] sm:$0xf]
    %v75 = vld [vmem:[#allocation5 + $0x8] sm:$0xf]
    %v76 = vld [vmem:[#allocation5 + $0xc] sm:$0xf]
    %v77 = vld [vmem:[#allocation5 + $0x10] sm:$0xf]
    %v78 = vld [vmem:[#allocation5 + $0x14] sm:$0xf]
    %v79 = vld [vmem:[#allocation5 + $0x18] sm:$0xf]
    %v80 = vld [vmem:[#allocation5 + $0x1c] sm:$0xf]
    %v81 = vld [vmem:[#allocation5 + $0x20] sm:$0xf]
    %v82 = vld [vmem:[#allocation5 + $0x24] sm:$0xf]
    %v83 = vld [vmem:[#allocation5 + $0x28] sm:$0xf]
    %v84 = vld [vmem:[#allocation5 + $0x2c] sm:$0xf]
    %v85 = vld [vmem:[#allocation5 + $0x30] sm:$0xf]
    %v86 = vld [vmem:[#allocation5 + $0x34] sm:$0xf]
    %v87 = vld [vmem:[#allocation5 + $0x38] sm:$0xf]
    %v88 = vld [vmem:[#allocation5 + $0x3c] sm:$0xf]
    %v105 = vunpack.c.l.b16 %v57
    %v106 = vunpack.c.l.b16 %v58
    %v107 = vunpack.c.l.b16 %v59
    %v108 = vunpack.c.l.b16 %v60
    %v109 = vunpack.c.l.b16 %v61
    %v110 = vunpack.c.l.b16 %v62
    %v111 = vunpack.c.l.b16 %v63
    %v112 = vunpack.c.l.b16 %v64
    %v113 = vunpack.c.l.b16 %v65
    %v114 = vunpack.c.l.b16 %v66
    %v115 = vunpack.c.l.b16 %v67
    %v116 = vunpack.c.l.b16 %v68
    %v117 = vunpack.c.l.b16 %v69
    %v118 = vunpack.c.l.b16 %v70
    %v119 = vunpack.c.l.b16 %v71
    %v120 = vunpack.c.l.b16 %v72
    %v121 = vpack.c.b16 %v106, %v105
    %v122 = vpack.c.b16 %v108, %v107
    %v123 = vpack.c.b16 %v110, %v109
    %v124 = vpack.c.b16 %v112, %v111
    %v125 = vpack.c.b16 %v114, %v113
    %v126 = vpack.c.b16 %v116, %v115
    %v127 = vpack.c.b16 %v118, %v117
    %v128 = vpack.c.b16 %v120, %v119
    %v153 = vunpack.c.l.b16 %v73
    %v154 = vunpack.c.l.b16 %v74
    %v155 = vunpack.c.l.b16 %v75
    %v156 = vunpack.c.l.b16 %v76
    %v157 = vunpack.c.l.b16 %v77
    %v158 = vunpack.c.l.b16 %v78
    %v159 = vunpack.c.l.b16 %v79
    %v160 = vunpack.c.l.b16 %v80
    %v161 = vunpack.c.l.b16 %v81
    %v162 = vunpack.c.l.b16 %v82
    %v163 = vunpack.c.l.b16 %v83
    %v164 = vunpack.c.l.b16 %v84
    %v165 = vunpack.c.l.b16 %v85
    %v166 = vunpack.c.l.b16 %v86
    %v167 = vunpack.c.l.b16 %v87
    %v168 = vunpack.c.l.b16 %v88
    %v169 = vpack.c.b16 %v154, %v153
    %v170 = vpack.c.b16 %v156, %v155
    %v171 = vpack.c.b16 %v158, %v157
    %v172 = vpack.c.b16 %v160, %v159
    %v173 = vpack.c.b16 %v162, %v161
    %v174 = vpack.c.b16 %v164, %v163
    %v175 = vpack.c.b16 %v166, %v165
    %v176 = vpack.c.b16 %v168, %v167
    %185 = vmatprep.subr.bf16.mxu0 0
    %186 = vmatpush1.bf16.msra.mxu0 %v176
    %187 = vmatprep.subr.bf16.mxu0 0
    %188 = vmatpush1.bf16.msra.mxu0 %v175
    %189 = vmatprep.subr.bf16.mxu0 0
    %190 = vmatpush1.bf16.msra.mxu0 %v174
    %191 = vmatprep.subr.bf16.mxu0 0
    %192 = vmatpush1.bf16.msra.mxu0 %v173
    %193 = vmatprep.subr.bf16.mxu0 0
    %194 = vmatpush1.bf16.msra.mxu0 %v172
    %195 = vmatprep.subr.bf16.mxu0 0
    %196 = vmatpush1.bf16.msra.mxu0 %v171
    %197 = vmatprep.subr.bf16.mxu0 0
    %198 = vmatpush1.bf16.msra.mxu0 %v170
    %199 = vmatprep.subr.bf16.mxu0 0
    %200 = vmatpush1.bf16.msra.mxu0 %v169
    %201 = vmatprep.subr.bf16.mxu0 0
    %202 = vmatpush2.bf16.msra.mxu0 0
    %203 = vmatprep.subr.bf16.mxu0 0
    %204 = vmatpush2.bf16.msra.mxu0 0
    %205 = vmatprep.subr.bf16.mxu0 0
    %206 = vmatpush2.bf16.msra.mxu0 0
    %207 = vmatprep.subr.bf16.mxu0 0
    %208 = vmatpush2.bf16.msra.mxu0 0
    %209 = vmatprep.subr.bf16.mxu0 0
    %210 = vmatpush2.bf16.msra.mxu0 0
    %211 = vmatprep.subr.bf16.mxu0 0
    %212 = vmatpush2.bf16.msra.mxu0 0
    %213 = vmatprep.subr.bf16.mxu0 0
    %214 = vmatpush2.bf16.msra.mxu0 0
    %215 = vmatprep.subr.bf16.mxu0 0
    %216 = vmatpush2.bf16.msra.mxu0 0
    %217 = vmatprep.mubr.bf16.mxu0 0
    %218 = vmatmul.mubr.bf16.gmra.mxu0 %v121
    %v219 = vpop.f32.mrf.mxu0
    %v220 = vadd.f32 0.0, %v219
    %v221 = vpop.f32.mrf.mxu0
    %v222 = vpop.f32.mrf.mxu0
    %v223 = vadd.f32 0.0, %v222
    %v224 = vpop.f32.mrf.mxu0
    %225 = vmatprep.mubr.bf16.mxu0 0
    %226 = vmatmul.mubr.bf16.gmra.mxu0 %v122
    %v227 = vpop.f32.mrf.mxu0
    %v228 = vadd.f32 0.0, %v227
    %v229 = vpop.f32.mrf.mxu0
    %v230 = vpop.f32.mrf.mxu0
    %v231 = vadd.f32 0.0, %v230
    %v232 = vpop.f32.mrf.mxu0
    %233 = vmatprep.mubr.bf16.mxu0 0
    %234 = vmatmul.mubr.bf16.gmra.mxu0 %v123
    %v235 = vpop.f32.mrf.mxu0
    %v236 = vadd.f32 0.0, %v235
    %v237 = vpop.f32.mrf.mxu0
    %v238 = vpop.f32.mrf.mxu0
    %v239 = vadd.f32 0.0, %v238
    %v240 = vpop.f32.mrf.mxu0
    %241 = vmatprep.mubr.bf16.mxu0 0
    %242 = vmatmul.mubr.bf16.gmra.mxu0 %v124
    %v243 = vpop.f32.mrf.mxu0
    %v244 = vadd.f32 0.0, %v243
    %v245 = vpop.f32.mrf.mxu0
    %v246 = vpop.f32.mrf.mxu0
    %v247 = vadd.f32 0.0, %v246
    %v248 = vpop.f32.mrf.mxu0
    %249 = vmatprep.mubr.bf16.mxu0 0
    %250 = vmatmul.mubr.bf16.gmra.mxu0 %v125
    %v251 = vpop.f32.mrf.mxu0
    %v252 = vadd.f32 0.0, %v251
    %v253 = vpop.f32.mrf.mxu0
    %v254 = vpop.f32.mrf.mxu0
    %v255 = vadd.f32 0.0, %v254
    %v256 = vpop.f32.mrf.mxu0
    %257 = vmatprep.mubr.bf16.mxu0 0
    %258 = vmatmul.mubr.bf16.gmra.mxu0 %v126
    %v259 = vpop.f32.mrf.mxu0
    %v260 = vadd.f32 0.0, %v259
    %v261 = vpop.f32.mrf.mxu0
    %v262 = vpop.f32.mrf.mxu0
    %v263 = vadd.f32 0.0, %v262
    %v264 = vpop.f32.mrf.mxu0
    %265 = vmatprep.mubr.bf16.mxu0 0
    %266 = vmatmul.mubr.bf16.gmra.mxu0 %v127
    %v267 = vpop.f32.mrf.mxu0
    %v268 = vadd.f32 0.0, %v267
    %v269 = vpop.f32.mrf.mxu0
    %v270 = vpop.f32.mrf.mxu0
    %v271 = vadd.f32 0.0, %v270
    %v272 = vpop.f32.mrf.mxu0
    %273 = vmatprep.mubr.bf16.mxu0 0
    %274 = vmatmul.mubr.bf16.gmra.mxu0 %v128
    %v275 = vpop.f32.mrf.mxu0
    %v276 = vadd.f32 0.0, %v275
    %v277 = vpop.f32.mrf.mxu0
    %v278 = vpop.f32.mrf.mxu0
    %v279 = vadd.f32 0.0, %v278
    %v280 = vpop.f32.mrf.mxu0
    %281 = vdwg.mxu0
    %v282 = vld [vmem:[#allocation7] sm:$0xf]
    %v283 = vld [vmem:[#allocation7 + $0x4] sm:$0xf]
    %v284 = vld [vmem:[#allocation7 + $0x8] sm:$0xf]
    %v285 = vld [vmem:[#allocation7 + $0xc] sm:$0xf]
    %v286 = vld [vmem:[#allocation7 + $0x10] sm:$0xf]
    %v287 = vld [vmem:[#allocation7 + $0x14] sm:$0xf]
    %v288 = vld [vmem:[#allocation7 + $0x18] sm:$0xf]
    %v289 = vld [vmem:[#allocation7 + $0x1c] sm:$0xf]
    %v290 = vld [vmem:[#allocation7 + $0x20] sm:$0xf]
    %v291 = vld [vmem:[#allocation7 + $0x24] sm:$0xf]
    %v292 = vld [vmem:[#allocation7 + $0x28] sm:$0xf]
    %v293 = vld [vmem:[#allocation7 + $0x2c] sm:$0xf]
    %v294 = vld [vmem:[#allocation7 + $0x30] sm:$0xf]
    %v295 = vld [vmem:[#allocation7 + $0x34] sm:$0xf]
    %v296 = vld [vmem:[#allocation7 + $0x38] sm:$0xf]
    %v297 = vld [vmem:[#allocation7 + $0x3c] sm:$0xf]
    %v298 = vpack.c.bf16 %v223, %v220
    %v299 = vpack.c.bf16 %v231, %v228
    %v300 = vpack.c.bf16 %v239, %v236
    %v301 = vpack.c.bf16 %v247, %v244
    %v302 = vpack.c.bf16 %v255, %v252
    %v303 = vpack.c.bf16 %v263, %v260
    %v304 = vpack.c.bf16 %v271, %v268
    %v305 = vpack.c.bf16 %v279, %v276
    %v322 = vunpack.c.l.b16 %v282
    %v323 = vunpack.c.l.b16 %v283
    %v324 = vunpack.c.l.b16 %v284
    %v325 = vunpack.c.l.b16 %v285
    %v326 = vunpack.c.l.b16 %v286
    %v327 = vunpack.c.l.b16 %v287
    %v328 = vunpack.c.l.b16 %v288
    %v329 = vunpack.c.l.b16 %v289
    %v330 = vunpack.c.l.b16 %v290
    %v331 = vunpack.c.l.b16 %v291
    %v332 = vunpack.c.l.b16 %v292
    %v333 = vunpack.c.l.b16 %v293
    %v334 = vunpack.c.l.b16 %v294
    %v335 = vunpack.c.l.b16 %v295
    %v336 = vunpack.c.l.b16 %v296
    %v337 = vunpack.c.l.b16 %v297
    %v338 = vpack.c.b16 %v323, %v322
    %v339 = vpack.c.b16 %v325, %v324
    %v340 = vpack.c.b16 %v327, %v326
    %v341 = vpack.c.b16 %v329, %v328
    %v342 = vpack.c.b16 %v331, %v330
    %v343 = vpack.c.b16 %v333, %v332
    %v344 = vpack.c.b16 %v335, %v334
    %v345 = vpack.c.b16 %v337, %v336
    %354 = vmatprep.subr.bf16.mxu0 0
    %355 = vmatpush1.bf16.msra.mxu0 %v305
    %356 = vmatprep.subr.bf16.mxu0 0
    %357 = vmatpush1.bf16.msra.mxu0 %v304
    %358 = vmatprep.subr.bf16.mxu0 0
    %359 = vmatpush1.bf16.msra.mxu0 %v303
    %360 = vmatprep.subr.bf16.mxu0 0
    %361 = vmatpush1.bf16.msra.mxu0 %v302
    %362 = vmatprep.subr.bf16.mxu0 0
    %363 = vmatpush1.bf16.msra.mxu0 %v301
    %364 = vmatprep.subr.bf16.mxu0 0
    %365 = vmatpush1.bf16.msra.mxu0 %v300
    %366 = vmatprep.subr.bf16.mxu0 0
    %367 = vmatpush1.bf16.msra.mxu0 %v299
    %368 = vmatprep.subr.bf16.mxu0 0
    %369 = vmatpush1.bf16.msra.mxu0 %v298
    %370 = vmatprep.subr.bf16.mxu0 0
    %371 = vmatpush2.bf16.msra.mxu0 0
    %372 = vmatprep.subr.bf16.mxu0 0
    %373 = vmatpush2.bf16.msra.mxu0 0
    %374 = vmatprep.subr.bf16.mxu0 0
    %375 = vmatpush2.bf16.msra.mxu0 0
    %376 = vmatprep.subr.bf16.mxu0 0
    %377 = vmatpush2.bf16.msra.mxu0 0
    %378 = vmatprep.subr.bf16.mxu0 0
    %379 = vmatpush2.bf16.msra.mxu0 0
    %380 = vmatprep.subr.bf16.mxu0 0
    %381 = vmatpush2.bf16.msra.mxu0 0
    %382 = vmatprep.subr.bf16.mxu0 0
    %383 = vmatpush2.bf16.msra.mxu0 0
    %384 = vmatprep.subr.bf16.mxu0 0
    %385 = vmatpush2.bf16.msra.mxu0 0
    %386 = vmatprep.mubr.bf16.mxu0 0
    %387 = vmatmul.mubr.bf16.gmra.mxu0 %v338
    %v388 = vpop.f32.mrf.mxu0
    %v389 = vadd.f32 0.0, %v388
    %v390 = vpop.f32.mrf.mxu0
    %v391 = vpop.f32.mrf.mxu0
    %v392 = vadd.f32 0.0, %v391
    %v393 = vpop.f32.mrf.mxu0
    %394 = vmatprep.mubr.bf16.mxu0 0
    %395 = vmatmul.mubr.bf16.gmra.mxu0 %v339
    %v396 = vpop.f32.mrf.mxu0
    %v397 = vadd.f32 0.0, %v396
    %v398 = vpop.f32.mrf.mxu0
    %v399 = vpop.f32.mrf.mxu0
    %v400 = vadd.f32 0.0, %v399
    %v401 = vpop.f32.mrf.mxu0
    %402 = vmatprep.mubr.bf16.mxu0 0
    %403 = vmatmul.mubr.bf16.gmra.mxu0 %v340
    %v404 = vpop.f32.mrf.mxu0
    %v405 = vadd.f32 0.0, %v404
    %v406 = vpop.f32.mrf.mxu0
    %v407 = vpop.f32.mrf.mxu0
    %v408 = vadd.f32 0.0, %v407
    %v409 = vpop.f32.mrf.mxu0
    %410 = vmatprep.mubr.bf16.mxu0 0
    %411 = vmatmul.mubr.bf16.gmra.mxu0 %v341
    %v412 = vpop.f32.mrf.mxu0
    %v413 = vadd.f32 0.0, %v412
    %v414 = vpop.f32.mrf.mxu0
    %v415 = vpop.f32.mrf.mxu0
    %v416 = vadd.f32 0.0, %v415
    %v417 = vpop.f32.mrf.mxu0
    %418 = vmatprep.mubr.bf16.mxu0 0
    %419 = vmatmul.mubr.bf16.gmra.mxu0 %v342
    %v420 = vpop.f32.mrf.mxu0
    %v421 = vadd.f32 0.0, %v420
    %v422 = vpop.f32.mrf.mxu0
    %v423 = vpop.f32.mrf.mxu0
    %v424 = vadd.f32 0.0, %v423
    %v425 = vpop.f32.mrf.mxu0
    %426 = vmatprep.mubr.bf16.mxu0 0
    %427 = vmatmul.mubr.bf16.gmra.mxu0 %v343
    %v428 = vpop.f32.mrf.mxu0
    %v429 = vadd.f32 0.0, %v428
    %v430 = vpop.f32.mrf.mxu0
    %v431 = vpop.f32.mrf.mxu0
    %v432 = vadd.f32 0.0, %v431
    %v433 = vpop.f32.mrf.mxu0
    %434 = vmatprep.mubr.bf16.mxu0 0
    %435 = vmatmul.mubr.bf16.gmra.mxu0 %v344
    %v436 = vpop.f32.mrf.mxu0
    %v437 = vadd.f32 0.0, %v436
    %v438 = vpop.f32.mrf.mxu0
    %v439 = vpop.f32.mrf.mxu0
    %v440 = vadd.f32 0.0, %v439
    %v441 = vpop.f32.mrf.mxu0
    %442 = vmatprep.mubr.bf16.mxu0 0
    %443 = vmatmul.mubr.bf16.gmra.mxu0 %v345
    %v444 = vpop.f32.mrf.mxu0
    %v445 = vadd.f32 0.0, %v444
    %v446 = vpop.f32.mrf.mxu0
    %v447 = vpop.f32.mrf.mxu0
    %v448 = vadd.f32 0.0, %v447
    %v449 = vpop.f32.mrf.mxu0
    %450 = vdwg.mxu0
    %451 = vst [vmem:[#allocation8] sm:$0xff] %v389
    %452 = vst [vmem:[#allocation8 + $0x8] sm:$0xff] %v392
    %453 = vst [vmem:[#allocation8 + $0x10] sm:$0xff] %v397
    %454 = vst [vmem:[#allocation8 + $0x18] sm:$0xff] %v400
    %455 = vst [vmem:[#allocation8 + $0x20] sm:$0xff] %v405
    %456 = vst [vmem:[#allocation8 + $0x28] sm:$0xff] %v408
    %457 = vst [vmem:[#allocation8 + $0x30] sm:$0xff] %v413
    %458 = vst [vmem:[#allocation8 + $0x38] sm:$0xff] %v416
    %459 = vst [vmem:[#allocation8 + $0x40] sm:$0xff] %v421
    %460 = vst [vmem:[#allocation8 + $0x48] sm:$0xff] %v424
    %461 = vst [vmem:[#allocation8 + $0x50] sm:$0xff] %v429
    %462 = vst [vmem:[#allocation8 + $0x58] sm:$0xff] %v432
    %463 = vst [vmem:[#allocation8 + $0x60] sm:$0xff] %v437
    %464 = vst [vmem:[#allocation8 + $0x68] sm:$0xff] %v440
    %465 = vst [vmem:[#allocation8 + $0x70] sm:$0xff] %v445
    %466 = vst [vmem:[#allocation8 + $0x78] sm:$0xff] %v448
    // Predicated region
    $region26: #{tpu_custom_call.1} parent=1 // pred_check
      _
    $region27: #{tpu_custom_call.1} parent=1 // pred_check_branch
      %468 = sbr.rel (0) target = $region29
    $region28: #{tpu_custom_call.1} parent=1 // pred_region
      %s470 = ssub.s32 2048, 2048
      %471 = vsyncadd [#allocation4], %s470
      %s472 = sshll.u32 [#allocation8], 4
      %s473 = int_to_ptr.vmem [resolvable:$true] %s472
      %478 = dma.vmem_to_hbm [thread:$0]  %s473, 2048, %s3, [#allocation4], 128, 128, 8
    $region29: #{tpu_custom_call.1} parent=1 // pred_fallthru
      _
    // Predicated region
    $region30: #{tpu_custom_call.1} parent=1 // pred_check
      _
    $region31: #{tpu_custom_call.1} parent=1 // pred_check_branch
      %480 = sbr.rel (0) target = $region33
    $region32: #{tpu_custom_call.1} parent=1 // pred_region
      %481 = dma.done [#allocation4], 2048
    $region33: #{tpu_custom_call.1} parent=1 // pred_fallthru
      _
    %482 = vsyncpa [#allocation3], 1
    %483 = vsyncpa [#allocation6], 1
    %484 = vsyncpa [#allocation4], 1

</llo_original>
